<compile_context>
chip_gen: v6e
topology: v6e:2x2x1
jax: 0.10.0
libtpu: 0.0.40
codegen_flags: <defaults>
</compile_context>

<pallas_src>
import functools

import jax
import jax.numpy as jnp
from jax import lax
from jax.experimental import pallas as pl
from jax.experimental.pallas import tpu as pltpu

BN_EPS = 1e-5  # torch.nn.BatchNorm2d default


def _round_up(a: int, b: int) -> int:
    return (a + b - 1) // b * b


# ---------------- Pass 1: projection + per-image partial BN statistics ----------------
def _stats_kernel(p_ref, w_ref, stats_ref):
    # p_ref: (K, T) bf16   w_ref: (N_out, K) bf16 (resident)
    # stats_ref: (2, N_out, 1) f32   [0] = sum over tokens, [1] = sum of squares
    y = jnp.dot(w_ref[...], p_ref[...], preferred_element_type=jnp.float32)  # (N_out, T)
    stats_ref[0] = jnp.sum(y, axis=1, keepdims=True)
    stats_ref[1] = jnp.sum(y * y, axis=1, keepdims=True)


# ---------------- Pass 2: recompute projection + normalize, NCHW tile out ----------------
def _proj_norm_kernel(p_ref, w_ref, scale_ref, shift_ref, o_ref):
    # p_ref: (K, T) bf16   w_ref: (N_out, K) bf16   scale/shift: (N_out, 1) f32
    # o_ref: (N_out, T) -> directly the [b, :, :] slab of the NCHW output.
    y = jnp.dot(w_ref[...], p_ref[...], preferred_element_type=jnp.float32)  # (N_out, T)
    o_ref[...] = (y * scale_ref[...] + shift_ref[...]).astype(o_ref.dtype)


def patch_embedding(x, weight, bias, gamma, beta, *, patch_size, stride,
                    mxu_dtype=jnp.bfloat16):
    """x: [B, C, H, W] (NCHW). weight: [N, C, p, p]. Returns [B, N, H//p, W//p]."""
    assert patch_size == stride, "kernel assumes non-overlapping patches (padding=0)"
    B, C, H, W = x.shape
    p = patch_size
    assert H % p == 0 and W % p == 0, "H and W must be divisible by patch_size"
    N = weight.shape[0]
    Hp, Wp = H // p, W // p
    T = Hp * Wp            # tokens per image
    K = C * p * p
    M = B * T              # total tokens (BN reduction count)
    N_out = _round_up(N, 8)

    # NOTE: `bias` is intentionally unused: a per-channel constant added before
    # training-mode BatchNorm cancels exactly (it shifts the mean only).
    # TODO(synk): reinstate the conv bias if eval-mode / running-stats BN is used.
    del bias

    # --- glue (XLA): K-major patch extraction -> [B, K, T] bf16 ---
    patches = (x.reshape(B, C, Hp, p, Wp, p)
                 .transpose(0, 1, 3, 5, 2, 4)
                 .reshape(B, K, T)
                 .astype(mxu_dtype))

    # --- glue: conv weight [N, C, p, p] -> [N_out, K] bf16 (zero-padded rows) ---
    w_nk = weight.reshape(N, K).astype(mxu_dtype)
    gamma_f = gamma.astype(jnp.float32)
    beta_f = beta.astype(jnp.float32)
    if N_out > N:
        w_nk = jnp.pad(w_nk, ((0, N_out - N), (0, 0)))
        gamma_f = jnp.pad(gamma_f, (0, N_out - N))
        beta_f = jnp.pad(beta_f, (0, N_out - N))

    # ---- pass 1: per-image partial stats only (tiny output, no Y intermediate) ----
    stats = pl.pallas_call(
        _stats_kernel,
        out_shape=jax.ShapeDtypeStruct((B, 2, N_out, 1), jnp.float32),
        grid=(B,),
        in_specs=[
            pl.BlockSpec((None, K, T), lambda b: (b, 0, 0)),
            pl.BlockSpec((N_out, K), lambda b: (0, 0)),        # weight stays resident
        ],
        out_specs=pl.BlockSpec((None, 2, N_out, 1), lambda b: (b, 0, 0, 0)),
        compiler_params=pltpu.CompilerParams(dimension_semantics=("parallel",)),
    )(patches, w_nk)

    # ---- tiny finalize (plain JAX): Chan/Welford merge of per-image stats ----
    s1 = stats[:, 0, :, 0]                     # (B, N_out)  sum(y)   per channel per image
    s2 = stats[:, 1, :, 0]                     # (B, N_out)  sum(y^2) per channel per image
    mean_t = s1 / T                            # per-image channel means
    m2_t = jnp.maximum(s2 - T * mean_t * mean_t, 0.0)   # per-image centered M2
    mean = jnp.sum(s1, axis=0) / M             # (N_out,)
    m2 = jnp.sum(m2_t, axis=0) + T * jnp.sum((mean_t - mean[None, :]) ** 2, axis=0)
    var = m2 / M                               # biased variance (training-mode BN)
    inv = lax.rsqrt(var + BN_EPS)
    scale = (gamma_f * inv).reshape(N_out, 1)
    shift = (beta_f - mean * gamma_f * inv).reshape(N_out, 1)

    # ---- pass 2: recompute projection, apply scale/shift, write NCHW directly ----
    out = pl.pallas_call(
        _proj_norm_kernel,
        out_shape=jax.ShapeDtypeStruct((B, N_out, T), x.dtype),
        grid=(B,),
        in_specs=[
            pl.BlockSpec((None, K, T), lambda b: (b, 0, 0)),
            pl.BlockSpec((N_out, K), lambda b: (0, 0)),
            pl.BlockSpec((N_out, 1), lambda b: (0, 0)),
            pl.BlockSpec((N_out, 1), lambda b: (0, 0)),
        ],
        out_specs=pl.BlockSpec((None, N_out, T), lambda b: (b, 0, 0)),
        compiler_params=pltpu.CompilerParams(dimension_semantics=("parallel",)),
    )(patches, w_nk, scale, shift)

    if N_out > N:
        out = out[:, :N, :]
    return out.reshape(B, N, Hp, Wp)           # contiguous reshape, no transpose


def reference(x, weight, bias, gamma, beta, *, patch_size, stride,
              matmul_dtype=jnp.float32):
    """Pure-JAX reference: Conv2d (incl. bias) + training-mode BatchNorm2d."""
    y = lax.conv_general_dilated(
        x.astype(matmul_dtype), weight.astype(matmul_dtype),
        window_strides=(stride, stride), padding="VALID",
        dimension_numbers=("NCHW", "OIHW", "NCHW"),
        preferred_element_type=jnp.float32,
    ) + bias.reshape(1, -1, 1, 1)
    mean = y.mean(axis=(0, 2, 3), keepdims=True)
    var = ((y - mean) ** 2).mean(axis=(0, 2, 3), keepdims=True)
    return (gamma.reshape(1, -1, 1, 1) * (y - mean) * lax.rsqrt(var + BN_EPS)
            + beta.reshape(1, -1, 1, 1)).astype(x.dtype)


if __name__ == "__main__":
    # Small shapes consistent with PatchEmbedding: B=2, in_chans=4, H=W=16,
    # patch_size=stride=4, embed_dim=32  ->  output [2, 32, 4, 4].
    B, C, H, W = 2, 4, 16, 16
    patch_size = stride = 4
    embed_dim = 32

    key = jax.random.PRNGKey(0)
    kx, kw, kb, kg, kbe = jax.random.split(key, 5)
    x = jax.random.normal(kx, (B, C, H, W), dtype=jnp.float32)
    weight = jax.random.normal(kw, (embed_dim, C, patch_size, patch_size), jnp.float32) * 0.05
    bias = jax.random.normal(kb, (embed_dim,), jnp.float32) * 0.05
    gamma = 1.0 + 0.1 * jax.random.normal(kg, (embed_dim,), jnp.float32)
    beta = 0.1 * jax.random.normal(kbe, (embed_dim,), jnp.float32)

    fn = jax.jit(functools.partial(patch_embedding, patch_size=patch_size, stride=stride))
    out = jax.block_until_ready(fn(x, weight, bias, gamma, beta))
    assert out.shape == (B, embed_dim, H // stride, W // stride), out.shape

    # Strict check vs. a reference using the same bf16 MXU operands as the kernel.
    ref_bf16 = reference(x, weight, bias, gamma, beta,
                         patch_size=patch_size, stride=stride,
                         matmul_dtype=jnp.bfloat16)
    assert jnp.allclose(out, ref_bf16, atol=2e-3, rtol=2e-3), \
        float(jnp.abs(out - ref_bf16).max())

    # Looser check vs. the full-f32 (PyTorch-semantics) reference; the gap is
    # only bf16 rounding of the MXU operands.
    ref_f32 = reference(x, weight, bias, gamma, beta,
                        patch_size=patch_size, stride=stride,
                        matmul_dtype=jnp.float32)
    assert jnp.allclose(out, ref_f32, atol=5e-2, rtol=5e-2), \
        float(jnp.abs(out - ref_f32).max())

    print("KERNEL_OK")
</pallas_src>

<mosaic_0001>
module attributes {stable_mosaic.version = 11 : i64} {
  func.func @_stats_kernel(%arg0: i32, %arg1: memref<1x64x16xbf16, #tpu.memory_space<vmem>>, %arg2: memref<32x64xbf16, #tpu.memory_space<vmem>>, %arg3: memref<1x2x32x1xf32, #tpu.memory_space<vmem>>) attributes {dimension_semantics = [#tpu.dimension_semantics<parallel>], iteration_bounds = array<i64: 2>, scalar_prefetch = 0 : i64, scratch_operands = 0 : i64, tpu.core_type = #tpu.core_type<tc>, window_params = [{transform_indices = @transform_0, window_bounds = array<i64: 1, 64, 16>}, {pipeline_mode = #tpu.pipeline_mode<synchronous>, transform_indices = @transform_1, window_bounds = array<i64: 32, 64>}, {transform_indices = @transform_2, window_bounds = array<i64: 1, 2, 32, 1>}]} {
    %c0 = arith.constant 0 : index
    %c0_0 = arith.constant 0 : index
    %0 = vector.load %arg2[%c0, %c0_0] : memref<32x64xbf16, #tpu.memory_space<vmem>>, vector<32x64xbf16>
    %c0_1 = arith.constant 0 : index
    %c0_2 = arith.constant 0 : index
    %c0_3 = arith.constant 0 : index
    %1 = vector.load %arg1[%c0_1, %c0_2, %c0_3] : memref<1x64x16xbf16, #tpu.memory_space<vmem>>, vector<1x64x16xbf16>
    %2 = vector.shape_cast %1 : vector<1x64x16xbf16> to vector<64x16xbf16>
    %cst = arith.constant dense<0.000000e+00> : vector<32x16xf32>
    %3 = tpu.matmul %0, %2, %cst {dimension_numbers = #tpu.dot_dimension_numbers<[1], [0], [0], [1], [0, 0, 1, 1], [], []>} : vector<32x64xbf16>, vector<64x16xbf16>, vector<32x16xf32> -> vector<32x16xf32>
    %cst_4 = arith.constant dense<0.000000e+00> : vector<32xf32>
    %4 = vector.multi_reduction <add>, %3, %cst_4 [1] : vector<32x16xf32> to vector<32xf32>
    %5 = vector.shape_cast %4 : vector<32xf32> to vector<32x1xf32>
    %c0_5 = arith.constant 0 : index
    %c0_6 = arith.constant 0 : index
    %c0_7 = arith.constant 0 : index
    %c0_8 = arith.constant 0 : index
    %6 = vector.load %arg3[%c0_5, %c0_6, %c0_7, %c0_8] : memref<1x2x32x1xf32, #tpu.memory_space<vmem>>, vector<1x1x32x1xf32>
    %7 = vector.shape_cast %6 : vector<1x1x32x1xf32> to vector<32x1xf32>
    %8 = vector.shape_cast %5 : vector<32x1xf32> to vector<1x1x32x1xf32>
    tpu.vector_store %arg3[%c0_5, %c0_6, %c0_7, %c0_8], %8 {strides = array<i32>} : memref<1x2x32x1xf32, #tpu.memory_space<vmem>>, vector<1x1x32x1xf32>,
    %9 = arith.mulf %3, %3 : vector<32x16xf32>
    %cst_9 = arith.constant dense<0.000000e+00> : vector<32xf32>
    %10 = vector.multi_reduction <add>, %9, %cst_9 [1] : vector<32x16xf32> to vector<32xf32>
    %11 = vector.shape_cast %10 : vector<32xf32> to vector<32x1xf32>
    %c0_10 = arith.constant 0 : index
    %c1 = arith.constant 1 : index
    %c0_11 = arith.constant 0 : index
    %c0_12 = arith.constant 0 : index
    %12 = vector.load %arg3[%c0_10, %c1, %c0_11, %c0_12] : memref<1x2x32x1xf32, #tpu.memory_space<vmem>>, vector<1x1x32x1xf32>
    %13 = vector.shape_cast %12 : vector<1x1x32x1xf32> to vector<32x1xf32>
    %14 = vector.shape_cast %11 : vector<32x1xf32> to vector<1x1x32x1xf32>
    tpu.vector_store %arg3[%c0_10, %c1, %c0_11, %c0_12], %14 {strides = array<i32>} : memref<1x2x32x1xf32, #tpu.memory_space<vmem>>, vector<1x1x32x1xf32>,
    return
  }
  func.func @transform_0(%arg0: i32) -> (i32, i32, i32) {
    %c0_i32 = arith.constant 0 : i32
    %c0_i32_0 = arith.constant 0 : i32
    %c0_i32_1 = arith.constant 0 : i32
    return %arg0, %c0_i32, %c0_i32_0 : i32, i32, i32
  }
  func.func @transform_1(%arg0: i32) -> (i32, i32) {
    %c0_i32 = arith.constant 0 : i32
    %c0_i32_0 = arith.constant 0 : i32
    %c0_i32_1 = arith.constant 0 : i32
    return %c0_i32, %c0_i32_0 : i32, i32
  }
  func.func @transform_2(%arg0: i32) -> (i32, i32, i32, i32) {
    %c0_i32 = arith.constant 0 : i32
    %c0_i32_0 = arith.constant 0 : i32
    %c0_i32_1 = arith.constant 0 : i32
    %c0_i32_2 = arith.constant 0 : i32
    return %arg0, %c0_i32, %c0_i32_0, %c0_i32_1 : i32, i32, i32, i32
  }
}

module attributes {stable_mosaic.version = 11 : i64} {
  func.func @_proj_norm_kernel(%arg0: i32, %arg1: memref<1x64x16xbf16, #tpu.memory_space<vmem>>, %arg2: memref<32x64xbf16, #tpu.memory_space<vmem>>, %arg3: memref<32x1xf32, #tpu.memory_space<vmem>>, %arg4: memref<32x1xf32, #tpu.memory_space<vmem>>, %arg5: memref<1x32x16xf32, #tpu.memory_space<vmem>>) attributes {dimension_semantics = [#tpu.dimension_semantics<parallel>], iteration_bounds = array<i64: 2>, scalar_prefetch = 0 : i64, scratch_operands = 0 : i64, tpu.core_type = #tpu.core_type<tc>, window_params = [{transform_indices = @transform_0, window_bounds = array<i64: 1, 64, 16>}, {pipeline_mode = #tpu.pipeline_mode<synchronous>, transform_indices = @transform_1, window_bounds = array<i64: 32, 64>}, {pipeline_mode = #tpu.pipeline_mode<synchronous>, transform_indices = @transform_2, window_bounds = array<i64: 32, 1>}, {pipeline_mode = #tpu.pipeline_mode<synchronous>, transform_indices = @transform_3, window_bounds = array<i64: 32, 1>}, {transform_indices = @transform_4, window_bounds = array<i64: 1, 32, 16>}]} {
    %c0 = arith.constant 0 : index
    %c0_0 = arith.constant 0 : index
    %0 = vector.load %arg2[%c0, %c0_0] : memref<32x64xbf16, #tpu.memory_space<vmem>>, vector<32x64xbf16>
    %c0_1 = arith.constant 0 : index
    %c0_2 = arith.constant 0 : index
    %c0_3 = arith.constant 0 : index
    %1 = vector.load %arg1[%c0_1, %c0_2, %c0_3] : memref<1x64x16xbf16, #tpu.memory_space<vmem>>, vector<1x64x16xbf16>
    %2 = vector.shape_cast %1 : vector<1x64x16xbf16> to vector<64x16xbf16>
    %cst = arith.constant dense<0.000000e+00> : vector<32x16xf32>
    %3 = tpu.matmul %0, %2, %cst {dimension_numbers = #tpu.dot_dimension_numbers<[1], [0], [0], [1], [0, 0, 1, 1], [], []>} : vector<32x64xbf16>, vector<64x16xbf16>, vector<32x16xf32> -> vector<32x16xf32>
    %c0_4 = arith.constant 0 : index
    %c0_5 = arith.constant 0 : index
    %4 = vector.load %arg3[%c0_4, %c0_5] : memref<32x1xf32, #tpu.memory_space<vmem>>, vector<32x1xf32>
    %5 = vector.broadcast %4 : vector<32x1xf32> to vector<32x16xf32>
    %6 = arith.mulf %3, %5 : vector<32x16xf32>
    %c0_6 = arith.constant 0 : index
    %c0_7 = arith.constant 0 : index
    %7 = vector.load %arg4[%c0_6, %c0_7] : memref<32x1xf32, #tpu.memory_space<vmem>>, vector<32x1xf32>
    %8 = vector.broadcast %7 : vector<32x1xf32> to vector<32x16xf32>
    %9 = arith.addf %6, %8 : vector<32x16xf32>
    %c0_8 = arith.constant 0 : index
    %c0_9 = arith.constant 0 : index
    %c0_10 = arith.constant 0 : index
    %10 = vector.load %arg5[%c0_8, %c0_9, %c0_10] : memref<1x32x16xf32, #tpu.memory_space<vmem>>, vector<1x32x16xf32>
    %11 = vector.shape_cast %10 : vector<1x32x16xf32> to vector<32x16xf32>
    %12 = vector.shape_cast %9 : vector<32x16xf32> to vector<1x32x16xf32>
    tpu.vector_store %arg5[%c0_8, %c0_9, %c0_10], %12 {strides = array<i32>} : memref<1x32x16xf32, #tpu.memory_space<vmem>>, vector<1x32x16xf32>,
    return
  }
  func.func @transform_0(%arg0: i32) -> (i32, i32, i32) {
    %c0_i32 = arith.constant 0 : i32
    %c0_i32_0 = arith.constant 0 : i32
    %c0_i32_1 = arith.constant 0 : i32
    return %arg0, %c0_i32, %c0_i32_0 : i32, i32, i32
  }
  func.func @transform_1(%arg0: i32) -> (i32, i32) {
    %c0_i32 = arith.constant 0 : i32
    %c0_i32_0 = arith.constant 0 : i32
    %c0_i32_1 = arith.constant 0 : i32
    return %c0_i32, %c0_i32_0 : i32, i32
  }
  func.func @transform_2(%arg0: i32) -> (i32, i32) {
    %c0_i32 = arith.constant 0 : i32
    %c0_i32_0 = arith.constant 0 : i32
    %c0_i32_1 = arith.constant 0 : i32
    return %c0_i32, %c0_i32_0 : i32, i32
  }
  func.func @transform_3(%arg0: i32) -> (i32, i32) {
    %c0_i32 = arith.constant 0 : i32
    %c0_i32_0 = arith.constant 0 : i32
    %c0_i32_1 = arith.constant 0 : i32
    return %c0_i32, %c0_i32_0 : i32, i32
  }
  func.func @transform_4(%arg0: i32) -> (i32, i32, i32) {
    %c0_i32 = arith.constant 0 : i32
    %c0_i32_0 = arith.constant 0 : i32
    %c0_i32_1 = arith.constant 0 : i32
    return %arg0, %c0_i32, %c0_i32_0 : i32, i32, i32
  }
}

</mosaic_0001>

<llo_original>
// kernel: patch_embedding.2
$region0: #{patch_embedding.2}
  #allocation0 [shape = 'u32[]', space=smem, size = 0x4, offset = 0x4, fixed_abs, tag = 'smem constant byte address 0x4 - core index']
  #allocation1 [shape = 'u32[144,128]{1,0:T(1,128)}', space=vmem, size = 0x12000, scoped, tag = 'internal scratch']
  %s0 = inlined_call_operand.vmem [shape: bf16[2,64,16], index: 0, kind: input, shape index: {}]
  %s1 = inlined_call_operand.vmem [shape: bf16[32,64], index: 1, kind: input, shape index: {}]
  %s2 = inlined_call_operand.vmem [shape: f32[2,2,32,1], index: 2, kind: output, shape index: {}]
  %s3 = sld [smem:[#allocation0]]
  $region41: #{patch_embedding.2} parent=0
    _
  %s5 = ssub.s32 1, %s3
  %s6 = scalar_select 0, %s5, %s3
  loop: start=0, step=1, limit=4
  $region2: #{patch_embedding.2} parent=0 // loop_pre_header
    _
  $region3: #{patch_embedding.2} parent=0 // loop_header
    %s8 = sphi 0, %s12
    %p9 = scmp.ge.s32.totalorder %s8, 4
    %s18 = sphi 0, %s20
    %s21 = sphi 0, %s18
    %s22 = sphi 0, %s21
    %s38 = sphi 0, %s22
    %s42 = sphi 0, %s42
    %s44 = sphi 0, %s42
    %s45 = sphi 0, %s44
    %s59 = sphi 0, %s45
    %s65 = sphi 0, %s67
    %s68 = sphi 0, %s65
    %s69 = sphi 0, %s68
    %s85 = sphi 0, %s69
  $region4: #{patch_embedding.2} parent=0 // loop_header_branch
    %11 = sbr.rel (%p9) target = $region8
  $region5: #{patch_embedding.2} parent=0 // loop_body
    %s13 = ssub.s32 %s8, 1
    %s14 = ssub.s32 %s8, 2
    %s15 = sadd.s32 %s8, 1
    %s16 = ssub.s32 %s8, %s15
    %p17 = scmp.eq.s32.totalorder %s16, 0
    %s19 = sadd.s32 %s18, 1
    %s20 = scalar_select %p17, %s18, %s19
    %p23 = pneg %p17
    %p24 = scmp.eq.s32.totalorder %s8, 1
    %p25 = por %p23, %p24
    %p26 = scmp.ne.s32.totalorder %s18, %s21
    %p27 = scmp.eq.s32.totalorder %s8, 0
    %p28 = por %p26, %p27
    %p29 = scmp.ne.s32.totalorder %s18, %s21
    %p30 = scmp.eq.s32.totalorder %s13, 1
    %p31 = por %p29, %p30
    %p32 = scmp.ne.s32.totalorder %s21, %s22
    %p33 = scmp.eq.s32.totalorder %s13, 0
    %p34 = por %p32, %p33
    %p35 = scmp.ne.s32.totalorder %s21, %s22
    %p36 = scmp.eq.s32.totalorder %s14, 1
    %p37 = por %p35, %p36
    %p39 = scmp.ne.s32.totalorder %s22, %s38
    %p40 = scmp.eq.s32.totalorder %s14, 0
    %p41 = por %p39, %p40
    %s43 = sadd.s32 %s42, 1
    %p46 = scmp.eq.s32.totalorder %s8, 1
    %p47 = scmp.ne.s32.totalorder %s42, %s44
    %p48 = scmp.eq.s32.totalorder %s8, 0
    %p49 = por %p47, %p48
    %p50 = scmp.ne.s32.totalorder %s42, %s44
    %p51 = scmp.eq.s32.totalorder %s13, 1
    %p52 = por %p50, %p51
    %p53 = scmp.ne.s32.totalorder %s44, %s45
    %p54 = scmp.eq.s32.totalorder %s13, 0
    %p55 = por %p53, %p54
    %p56 = scmp.ne.s32.totalorder %s44, %s45
    %p57 = scmp.eq.s32.totalorder %s14, 1
    %p58 = por %p56, %p57
    %p60 = scmp.ne.s32.totalorder %s45, %s59
    %p61 = scmp.eq.s32.totalorder %s14, 0
    %p62 = por %p60, %p61
    %s63 = ssub.s32 %s8, %s15
    %p64 = scmp.eq.s32.totalorder %s63, 0
    %s66 = sadd.s32 %s65, 1
    %s67 = scalar_select %p64, %s65, %s66
    %p70 = pneg %p64
    %p71 = scmp.eq.s32.totalorder %s8, 1
    %p72 = por %p70, %p71
    %p73 = scmp.ne.s32.totalorder %s65, %s68
    %p74 = scmp.eq.s32.totalorder %s8, 0
    %p75 = por %p73, %p74
    %p76 = scmp.ne.s32.totalorder %s65, %s68
    %p77 = scmp.eq.s32.totalorder %s13, 1
    %p78 = por %p76, %p77
    %p79 = scmp.ne.s32.totalorder %s68, %s69
    %p80 = scmp.eq.s32.totalorder %s13, 0
    %p81 = por %p79, %p80
    %p82 = scmp.ne.s32.totalorder %s68, %s69
    %p83 = scmp.eq.s32.totalorder %s14, 1
    %p84 = por %p82, %p83
    %p86 = scmp.ne.s32.totalorder %s69, %s85
    %p87 = scmp.eq.s32.totalorder %s14, 0
    %p88 = por %p86, %p87
    %p89 = scmp.le.s32.totalorder 1, %s8
    %p90 = scmp.lt.s32.totalorder %s8, 3
    %p91 = pnand %p89, %p90
    %p92 = pneg %p91
    // Predicated region
    $region9: #{patch_embedding.2} parent=5 // pred_check
      _
    $region10: #{patch_embedding.2} parent=5 // pred_check_branch
      %94 = sbr.rel (%p91) target = $region12
    $region11: #{patch_embedding.2} parent=5 // pred_region
      %s95 = ssub.s32 %s8, 1
      // Predicated region
      $region13: #{patch_embedding.2} parent=11 // pred_check
        %p96 = pneg %p55
      $region14: #{patch_embedding.2} parent=11 // pred_check_branch
        %98 = sbr.rel (%p96) target = $region16
      $region15: #{patch_embedding.2} parent=11 // pred_region
        _
      $region16: #{patch_embedding.2} parent=11 // pred_fallthru
        _
    $region12: #{patch_embedding.2} parent=5 // pred_fallthru
      _
    %p99 = scmp.lt.s32.totalorder %s8, 2
    // Predicated region
    $region17: #{patch_embedding.2} parent=5 // pred_check
      %p100 = pneg %p99
    $region18: #{patch_embedding.2} parent=5 // pred_check_branch
      %102 = sbr.rel (%p100) target = $region20
    $region19: #{patch_embedding.2} parent=5 // pred_region
      // Predicated region
      $region21: #{patch_embedding.2} parent=19 // pred_check
        %p103 = pneg %p28
      $region22: #{patch_embedding.2} parent=19 // pred_check_branch
        %105 = sbr.rel (%p103) target = $region24
      $region23: #{patch_embedding.2} parent=19 // pred_region
        %p106 = scmp.lt.s32.totalorder %s8, 1
        %s107 = scalar_select %p106, %s8, 1
        %s108 = smul.addr %s107, 8
        %s109 = smul.addr %s108, 4
        %s110 = scalar_lea.vmem %s0, %s109
      $region24: #{patch_embedding.2} parent=19 // pred_fallthru
        _
    $region20: #{patch_embedding.2} parent=5 // pred_fallthru
      _
    %p111 = scmp.le.s32.totalorder 1, %s8
    %p112 = scmp.lt.s32.totalorder %s8, 3
    %p113 = pnand %p111, %p112
    %p114 = pneg %p113
    // Predicated region
    $region25: #{patch_embedding.2} parent=5 // pred_check
      _
    $region26: #{patch_embedding.2} parent=5 // pred_check_branch
      %116 = sbr.rel (%p113) target = $region28
    $region27: #{patch_embedding.2} parent=5 // pred_region
      %s117 = ssub.s32 %s8, 1
      %p118 = scmp.lt.s32.totalorder %s13, 1
      %s119 = scalar_select %p118, %s13, 1
      %s120 = smul.addr %s119, 8
      %s121 = smul.addr %s120, 4
      %s122 = scalar_lea.vmem %s0, %s121
      %p123 = pneg %p34
      %p124 = pneg %p31
      %p125 = pneg %p55
      %p126 = pneg %p52
      %p127 = pneg %p81
      %p128 = pneg %p78
      %p129 = scmp.lt.s32.totalorder %s13, 1
      %s130 = scalar_select %p129, %s13, 1
      %s131 = smul.addr %s130, 8
      %s132 = smul.addr %s131, 8
      %s133 = scalar_lea.vmem %s2, %s132
      %p134 = scmp.lt.s32.totalorder %s13, 1
      %s135 = scalar_select %p134, %s13, 1
      %s136 = smul.addr %s135, 8
      %s137 = smul.addr %s136, 4
      %s138 = scalar_lea.vmem %s0, %s137
      %p139 = scmp.lt.s32.totalorder %s13, 1
      %s140 = scalar_select %p139, %s13, 1
      %s141 = smul.addr %s140, 8
      %s142 = smul.addr %s141, 8
      %s143 = scalar_lea.vmem %s2, %s142
      %v145 = vld [vmem:[%s1] sm:$0xf]
      %v146 = vld [vmem:[%s1 + $0x4] sm:$0xf]
      %v147 = vld [vmem:[%s1 + $0x8] sm:$0xf]
      %v148 = vld [vmem:[%s1 + $0xc] sm:$0xf]
      %v149 = vld [vmem:[%s138] sm:$0xf]
      %v150 = vld [vmem:[%s138 + $0x4] sm:$0xf]
      %v151 = vld [vmem:[%s138 + $0x8] sm:$0xf]
      %v152 = vld [vmem:[%s138 + $0xc] sm:$0xf]
      %v153 = vld [vmem:[%s138 + $0x10] sm:$0xf]
      %v154 = vld [vmem:[%s138 + $0x14] sm:$0xf]
      %v155 = vld [vmem:[%s138 + $0x18] sm:$0xf]
      %v156 = vld [vmem:[%s138 + $0x1c] sm:$0xf]
      %v161 = vunpack.c.l.b16 %v145
      %v162 = vunpack.c.l.b16 %v146
      %v163 = vunpack.c.l.b16 %v147
      %v164 = vunpack.c.l.b16 %v148
      %v165 = vpack.c.b16 %v162, %v161
      %v166 = vpack.c.b16 %v164, %v163
      %v175 = vunpack.c.l.b16 %v149
      %v176 = vunpack.c.l.b16 %v150
      %v177 = vunpack.c.l.b16 %v151
      %v178 = vunpack.c.l.b16 %v152
      %v179 = vunpack.c.l.b16 %v153
      %v180 = vunpack.c.l.b16 %v154
      %v181 = vunpack.c.l.b16 %v155
      %v182 = vunpack.c.l.b16 %v156
      %v183 = vpack.c.b16 %v176, %v175
      %v184 = vpack.c.b16 %v178, %v177
      %v185 = vpack.c.b16 %v180, %v179
      %v186 = vpack.c.b16 %v182, %v181
      %vm191 = vcmask 523264
      %v193 = vsel %vm191, %v165, 0
      %v196 = vsel %vm191, %v166, 0
      %198 = vmatprep.subr.bf16.mxu0 0
      %199 = vmatpush1.bf16.msra.mxu0 0
      %200 = vmatprep.subr.bf16.mxu0 0
      %201 = vmatpush1.bf16.msra.mxu0 0
      %202 = vmatprep.subr.bf16.mxu0 0
      %203 = vmatpush1.bf16.msra.mxu0 0
      %204 = vmatprep.subr.bf16.mxu0 0
      %205 = vmatpush1.bf16.msra.mxu0 0
      %206 = vmatprep.subr.bf16.mxu0 0
      %207 = vmatpush1.bf16.msra.mxu0 %v186
      %208 = vmatprep.subr.bf16.mxu0 0
      %209 = vmatpush1.bf16.msra.mxu0 %v185
      %210 = vmatprep.subr.bf16.mxu0 0
      %211 = vmatpush1.bf16.msra.mxu0 %v184
      %212 = vmatprep.subr.bf16.mxu0 0
      %213 = vmatpush1.bf16.msra.mxu0 %v183
      %214 = vmatprep.subr.bf16.mxu0 0
      %215 = vmatpush2.bf16.msra.mxu0 0
      %216 = vmatprep.subr.bf16.mxu0 0
      %217 = vmatpush2.bf16.msra.mxu0 0
      %218 = vmatprep.subr.bf16.mxu0 0
      %219 = vmatpush2.bf16.msra.mxu0 0
      %220 = vmatprep.subr.bf16.mxu0 0
      %221 = vmatpush2.bf16.msra.mxu0 0
      %222 = vmatprep.subr.bf16.mxu0 0
      %223 = vmatpush2.bf16.msra.mxu0 0
      %224 = vmatprep.subr.bf16.mxu0 0
      %225 = vmatpush2.bf16.msra.mxu0 0
      %226 = vmatprep.subr.bf16.mxu0 0
      %227 = vmatpush2.bf16.msra.mxu0 0
      %228 = vmatprep.subr.bf16.mxu0 0
      %229 = vmatpush2.bf16.msra.mxu0 0
      %230 = vmatprep.mubr.bf16.mxu0 0
      %231 = vmatmul.mubr.bf16.gmra.mxu0 %v193
      %v232 = vpop.f32.mrf.mxu0
      %v233 = vadd.f32 0.0, %v232
      %v234 = vpop.f32.mrf.mxu0
      %v235 = vpop.f32.mrf.mxu0
      %v236 = vadd.f32 0.0, %v235
      %v237 = vpop.f32.mrf.mxu0
      %238 = vmatprep.mubr.bf16.mxu0 0
      %239 = vmatmul.mubr.bf16.gmra.mxu0 %v196
      %v240 = vpop.f32.mrf.mxu0
      %v241 = vadd.f32 0.0, %v240
      %v242 = vpop.f32.mrf.mxu0
      %v243 = vpop.f32.mrf.mxu0
      %v244 = vadd.f32 0.0, %v243
      %v245 = vpop.f32.mrf.mxu0
      %246 = vdwg.mxu0
      %vm247 = vcmask 130048
      %v248 = vsel %vm247, %v233, 0.0
      %249 = vadd.xlane.f32.xlu0 %v248
      %v250 = vpop.xlane.xlu0 %249
      %v251 = vsel %vm247, %v236, 0.0
      %252 = vadd.xlane.f32.xlu0 %v251
      %v253 = vpop.xlane.xlu0 %252
      %v254 = vsel %vm247, %v241, 0.0
      %255 = vadd.xlane.f32.xlu0 %v254
      %v256 = vpop.xlane.xlu0 %255
      %v257 = vsel %vm247, %v244, 0.0
      %258 = vadd.xlane.f32.xlu0 %v257
      %v259 = vpop.xlane.xlu0 %258
      %vm260 = vcmask 7168
      %261 = vst.msk [vmem:[%s143] sm:$0xff] %vm260, %v250
      %262 = vst.msk [vmem:[%s143 + $0x8] sm:$0xff] %vm260, %v253
      %263 = vst.msk [vmem:[%s143 + $0x10] sm:$0xff] %vm260, %v256
      %264 = vst.msk [vmem:[%s143 + $0x18] sm:$0xff] %vm260, %v259
      %v265 = vmul.f32 %v233, %v233
      %v266 = vmul.f32 %v236, %v236
      %v267 = vmul.f32 %v241, %v241
      %v268 = vmul.f32 %v244, %v244
      %v269 = vsel %vm247, %v265, 0.0
      %270 = vadd.xlane.f32.xlu0 %v269
      %v271 = vpop.xlane.xlu0 %270
      %v272 = vsel %vm247, %v266, 0.0
      %273 = vadd.xlane.f32.xlu0 %v272
      %v274 = vpop.xlane.xlu0 %273
      %v275 = vsel %vm247, %v267, 0.0
      %276 = vadd.xlane.f32.xlu0 %v275
      %v277 = vpop.xlane.xlu0 %276
      %v278 = vsel %vm247, %v268, 0.0
      %279 = vadd.xlane.f32.xlu0 %v278
      %v280 = vpop.xlane.xlu0 %279
      %s281 = scalar_lea.vmem %s143, 32
      %282 = vst.msk [vmem:[%s281] sm:$0xff] %vm260, %v271
      %283 = vst.msk [vmem:[%s281 + $0x8] sm:$0xff] %vm260, %v274
      %284 = vst.msk [vmem:[%s281 + $0x10] sm:$0xff] %vm260, %v277
      %285 = vst.msk [vmem:[%s281 + $0x18] sm:$0xff] %vm260, %v280
      %p286 = scmp.lt.s32.totalorder %s13, 1
      %s287 = scalar_select %p286, %s13, 1
      %s288 = smul.addr %s287, 8
      %s289 = smul.addr %s288, 8
      %s290 = scalar_lea.vmem %s2, %s289
      // Predicated region
      $region29: #{patch_embedding.2} parent=27 // pred_check
        %p291 = pneg %p78
      $region30: #{patch_embedding.2} parent=27 // pred_check_branch
        %293 = sbr.rel (%p291) target = $region32
      $region31: #{patch_embedding.2} parent=27 // pred_region
        _
      $region32: #{patch_embedding.2} parent=27 // pred_fallthru
        _
    $region28: #{patch_embedding.2} parent=5 // pred_fallthru
      _
    %p294 = scmp.le.s32.totalorder 2, %s8
    // Predicated region
    $region33: #{patch_embedding.2} parent=5 // pred_check
      %p295 = pneg %p294
    $region34: #{patch_embedding.2} parent=5 // pred_check_branch
      %297 = sbr.rel (%p295) target = $region36
    $region35: #{patch_embedding.2} parent=5 // pred_region
      %s298 = ssub.s32 %s8, 2
      // Predicated region
      $region37: #{patch_embedding.2} parent=35 // pred_check
        %p299 = pneg %p84
      $region38: #{patch_embedding.2} parent=35 // pred_check_branch
        %301 = sbr.rel (%p299) target = $region40
      $region39: #{patch_embedding.2} parent=35 // pred_region
        %p302 = scmp.lt.s32.totalorder %s14, 1
        %s303 = scalar_select %p302, %s14, 1
        %s304 = smul.addr %s303, 8
        %s305 = smul.addr %s304, 8
        %s306 = scalar_lea.vmem %s2, %s305
      $region40: #{patch_embedding.2} parent=35 // pred_fallthru
        _
    $region36: #{patch_embedding.2} parent=5 // pred_fallthru
      _
  $region6: #{patch_embedding.2} parent=0 // loop_footer
    %s12 = sadd.s32 1, %s8
  $region7: #{patch_embedding.2} parent=0 // loop_footer_branch
    %7 = sbr.rel target = $region3
  $region8: #{patch_embedding.2} parent=0 // loop_exit
    _

// kernel: patch_embedding.3
$region0: #{patch_embedding.3}
  #allocation0 [shape = 'u32[]', space=smem, size = 0x4, offset = 0x4, fixed_abs, tag = 'smem constant byte address 0x4 - core index']
  #allocation1 [shape = 'u32[144,128]{1,0:T(1,128)}', space=vmem, size = 0x12000, scoped, tag = 'internal scratch']
  %s0 = inlined_call_operand.vmem [shape: bf16[2,64,16], index: 0, kind: input, shape index: {}]
  %s1 = inlined_call_operand.vmem [shape: bf16[32,64], index: 1, kind: input, shape index: {}]
  %s2 = inlined_call_operand.vmem [shape: f32[32,1], index: 2, kind: input, shape index: {}]
  %s3 = inlined_call_operand.vmem [shape: f32[32,1], index: 3, kind: input, shape index: {}]
  %s4 = inlined_call_operand.vmem [shape: f32[2,32,16], index: 4, kind: output, shape index: {}]
  %s5 = sld [smem:[#allocation0]]
  $region49: #{patch_embedding.3} parent=0
    _
  %s7 = ssub.s32 1, %s5
  %s8 = scalar_select 0, %s7, %s5
  loop: start=0, step=1, limit=4
  $region2: #{patch_embedding.3} parent=0 // loop_pre_header
    _
  $region3: #{patch_embedding.3} parent=0 // loop_header
    %s10 = sphi 0, %s14
    %p11 = scmp.ge.s32.totalorder %s10, 4
    %s20 = sphi 0, %s22
    %s23 = sphi 0, %s20
    %s24 = sphi 0, %s23
    %s40 = sphi 0, %s24
    %s44 = sphi 0, %s44
    %s46 = sphi 0, %s44
    %s47 = sphi 0, %s46
    %s61 = sphi 0, %s47
    %s65 = sphi 0, %s65
    %s67 = sphi 0, %s65
    %s68 = sphi 0, %s67
    %s82 = sphi 0, %s68
    %s86 = sphi 0, %s86
    %s88 = sphi 0, %s86
    %s89 = sphi 0, %s88
    %s103 = sphi 0, %s89
    %s109 = sphi 0, %s111
    %s112 = sphi 0, %s109
    %s113 = sphi 0, %s112
    %s129 = sphi 0, %s113
  $region4: #{patch_embedding.3} parent=0 // loop_header_branch
    %13 = sbr.rel (%p11) target = $region8
  $region5: #{patch_embedding.3} parent=0 // loop_body
    %s15 = ssub.s32 %s10, 1
    %s16 = ssub.s32 %s10, 2
    %s17 = sadd.s32 %s10, 1
    %s18 = ssub.s32 %s10, %s17
    %p19 = scmp.eq.s32.totalorder %s18, 0
    %s21 = sadd.s32 %s20, 1
    %s22 = scalar_select %p19, %s20, %s21
    %p25 = pneg %p19
    %p26 = scmp.eq.s32.totalorder %s10, 1
    %p27 = por %p25, %p26
    %p28 = scmp.ne.s32.totalorder %s20, %s23
    %p29 = scmp.eq.s32.totalorder %s10, 0
    %p30 = por %p28, %p29
    %p31 = scmp.ne.s32.totalorder %s20, %s23
    %p32 = scmp.eq.s32.totalorder %s15, 1
    %p33 = por %p31, %p32
    %p34 = scmp.ne.s32.totalorder %s23, %s24
    %p35 = scmp.eq.s32.totalorder %s15, 0
    %p36 = por %p34, %p35
    %p37 = scmp.ne.s32.totalorder %s23, %s24
    %p38 = scmp.eq.s32.totalorder %s16, 1
    %p39 = por %p37, %p38
    %p41 = scmp.ne.s32.totalorder %s24, %s40
    %p42 = scmp.eq.s32.totalorder %s16, 0
    %p43 = por %p41, %p42
    %s45 = sadd.s32 %s44, 1
    %p48 = scmp.eq.s32.totalorder %s10, 1
    %p49 = scmp.ne.s32.totalorder %s44, %s46
    %p50 = scmp.eq.s32.totalorder %s10, 0
    %p51 = por %p49, %p50
    %p52 = scmp.ne.s32.totalorder %s44, %s46
    %p53 = scmp.eq.s32.totalorder %s15, 1
    %p54 = por %p52, %p53
    %p55 = scmp.ne.s32.totalorder %s46, %s47
    %p56 = scmp.eq.s32.totalorder %s15, 0
    %p57 = por %p55, %p56
    %p58 = scmp.ne.s32.totalorder %s46, %s47
    %p59 = scmp.eq.s32.totalorder %s16, 1
    %p60 = por %p58, %p59
    %p62 = scmp.ne.s32.totalorder %s47, %s61
    %p63 = scmp.eq.s32.totalorder %s16, 0
    %p64 = por %p62, %p63
    %s66 = sadd.s32 %s65, 1
    %p69 = scmp.eq.s32.totalorder %s10, 1
    %p70 = scmp.ne.s32.totalorder %s65, %s67
    %p71 = scmp.eq.s32.totalorder %s10, 0
    %p72 = por %p70, %p71
    %p73 = scmp.ne.s32.totalorder %s65, %s67
    %p74 = scmp.eq.s32.totalorder %s15, 1
    %p75 = por %p73, %p74
    %p76 = scmp.ne.s32.totalorder %s67, %s68
    %p77 = scmp.eq.s32.totalorder %s15, 0
    %p78 = por %p76, %p77
    %p79 = scmp.ne.s32.totalorder %s67, %s68
    %p80 = scmp.eq.s32.totalorder %s16, 1
    %p81 = por %p79, %p80
    %p83 = scmp.ne.s32.totalorder %s68, %s82
    %p84 = scmp.eq.s32.totalorder %s16, 0
    %p85 = por %p83, %p84
    %s87 = sadd.s32 %s86, 1
    %p90 = scmp.eq.s32.totalorder %s10, 1
    %p91 = scmp.ne.s32.totalorder %s86, %s88
    %p92 = scmp.eq.s32.totalorder %s10, 0
    %p93 = por %p91, %p92
    %p94 = scmp.ne.s32.totalorder %s86, %s88
    %p95 = scmp.eq.s32.totalorder %s15, 1
    %p96 = por %p94, %p95
    %p97 = scmp.ne.s32.totalorder %s88, %s89
    %p98 = scmp.eq.s32.totalorder %s15, 0
    %p99 = por %p97, %p98
    %p100 = scmp.ne.s32.totalorder %s88, %s89
    %p101 = scmp.eq.s32.totalorder %s16, 1
    %p102 = por %p100, %p101
    %p104 = scmp.ne.s32.totalorder %s89, %s103
    %p105 = scmp.eq.s32.totalorder %s16, 0
    %p106 = por %p104, %p105
    %s107 = ssub.s32 %s10, %s17
    %p108 = scmp.eq.s32.totalorder %s107, 0
    %s110 = sadd.s32 %s109, 1
    %s111 = scalar_select %p108, %s109, %s110
    %p114 = pneg %p108
    %p115 = scmp.eq.s32.totalorder %s10, 1
    %p116 = por %p114, %p115
    %p117 = scmp.ne.s32.totalorder %s109, %s112
    %p118 = scmp.eq.s32.totalorder %s10, 0
    %p119 = por %p117, %p118
    %p120 = scmp.ne.s32.totalorder %s109, %s112
    %p121 = scmp.eq.s32.totalorder %s15, 1
    %p122 = por %p120, %p121
    %p123 = scmp.ne.s32.totalorder %s112, %s113
    %p124 = scmp.eq.s32.totalorder %s15, 0
    %p125 = por %p123, %p124
    %p126 = scmp.ne.s32.totalorder %s112, %s113
    %p127 = scmp.eq.s32.totalorder %s16, 1
    %p128 = por %p126, %p127
    %p130 = scmp.ne.s32.totalorder %s113, %s129
    %p131 = scmp.eq.s32.totalorder %s16, 0
    %p132 = por %p130, %p131
    %p133 = scmp.le.s32.totalorder 1, %s10
    %p134 = scmp.lt.s32.totalorder %s10, 3
    %p135 = pnand %p133, %p134
    %p136 = pneg %p135
    // Predicated region
    $region9: #{patch_embedding.3} parent=5 // pred_check
      _
    $region10: #{patch_embedding.3} parent=5 // pred_check_branch
      %138 = sbr.rel (%p135) target = $region12
    $region11: #{patch_embedding.3} parent=5 // pred_region
      %s139 = ssub.s32 %s10, 1
      // Predicated region
      $region13: #{patch_embedding.3} parent=11 // pred_check
        %p140 = pneg %p57
      $region14: #{patch_embedding.3} parent=11 // pred_check_branch
        %142 = sbr.rel (%p140) target = $region16
      $region15: #{patch_embedding.3} parent=11 // pred_region
        _
      $region16: #{patch_embedding.3} parent=11 // pred_fallthru
        _
      // Predicated region
      $region17: #{patch_embedding.3} parent=11 // pred_check
        %p143 = pneg %p78
      $region18: #{patch_embedding.3} parent=11 // pred_check_branch
        %145 = sbr.rel (%p143) target = $region20
      $region19: #{patch_embedding.3} parent=11 // pred_region
        _
      $region20: #{patch_embedding.3} parent=11 // pred_fallthru
        _
      // Predicated region
      $region21: #{patch_embedding.3} parent=11 // pred_check
        %p146 = pneg %p99
      $region22: #{patch_embedding.3} parent=11 // pred_check_branch
        %148 = sbr.rel (%p146) target = $region24
      $region23: #{patch_embedding.3} parent=11 // pred_region
        _
      $region24: #{patch_embedding.3} parent=11 // pred_fallthru
        _
    $region12: #{patch_embedding.3} parent=5 // pred_fallthru
      _
    %p149 = scmp.lt.s32.totalorder %s10, 2
    // Predicated region
    $region25: #{patch_embedding.3} parent=5 // pred_check
      %p150 = pneg %p149
    $region26: #{patch_embedding.3} parent=5 // pred_check_branch
      %152 = sbr.rel (%p150) target = $region28
    $region27: #{patch_embedding.3} parent=5 // pred_region
      // Predicated region
      $region29: #{patch_embedding.3} parent=27 // pred_check
        %p153 = pneg %p30
      $region30: #{patch_embedding.3} parent=27 // pred_check_branch
        %155 = sbr.rel (%p153) target = $region32
      $region31: #{patch_embedding.3} parent=27 // pred_region
        %p156 = scmp.lt.s32.totalorder %s10, 1
        %s157 = scalar_select %p156, %s10, 1
        %s158 = smul.addr %s157, 8
        %s159 = smul.addr %s158, 4
        %s160 = scalar_lea.vmem %s0, %s159
      $region32: #{patch_embedding.3} parent=27 // pred_fallthru
        _
    $region28: #{patch_embedding.3} parent=5 // pred_fallthru
      _
    %p161 = scmp.le.s32.totalorder 1, %s10
    %p162 = scmp.lt.s32.totalorder %s10, 3
    %p163 = pnand %p161, %p162
    %p164 = pneg %p163
    // Predicated region
    $region33: #{patch_embedding.3} parent=5 // pred_check
      _
    $region34: #{patch_embedding.3} parent=5 // pred_check_branch
      %166 = sbr.rel (%p163) target = $region36
    $region35: #{patch_embedding.3} parent=5 // pred_region
      %s167 = ssub.s32 %s10, 1
      %p168 = scmp.lt.s32.totalorder %s15, 1
      %s169 = scalar_select %p168, %s15, 1
      %s170 = smul.addr %s169, 8
      %s171 = smul.addr %s170, 4
      %s172 = scalar_lea.vmem %s0, %s171
      %p173 = pneg %p36
      %p174 = pneg %p33
      %p175 = pneg %p57
      %p176 = pneg %p54
      %p177 = pneg %p78
      %p178 = pneg %p75
      %p179 = pneg %p99
      %p180 = pneg %p96
      %p181 = pneg %p125
      %p182 = pneg %p122
      %p183 = scmp.lt.s32.totalorder %s15, 1
      %s184 = scalar_select %p183, %s15, 1
      %s185 = smul.addr %s184, 4
      %s186 = smul.addr %s185, 8
      %s187 = scalar_lea.vmem %s4, %s186
      %p188 = scmp.lt.s32.totalorder %s15, 1
      %s189 = scalar_select %p188, %s15, 1
      %s190 = smul.addr %s189, 8
      %s191 = smul.addr %s190, 4
      %s192 = scalar_lea.vmem %s0, %s191
      %p193 = scmp.lt.s32.totalorder %s15, 1
      %s194 = scalar_select %p193, %s15, 1
      %s195 = smul.addr %s194, 4
      %s196 = smul.addr %s195, 8
      %s197 = scalar_lea.vmem %s4, %s196
      %v199 = vld [vmem:[%s1] sm:$0xf]
      %v200 = vld [vmem:[%s1 + $0x4] sm:$0xf]
      %v201 = vld [vmem:[%s1 + $0x8] sm:$0xf]
      %v202 = vld [vmem:[%s1 + $0xc] sm:$0xf]
      %v203 = vld [vmem:[%s192] sm:$0xf]
      %v204 = vld [vmem:[%s192 + $0x4] sm:$0xf]
      %v205 = vld [vmem:[%s192 + $0x8] sm:$0xf]
      %v206 = vld [vmem:[%s192 + $0xc] sm:$0xf]
      %v207 = vld [vmem:[%s192 + $0x10] sm:$0xf]
      %v208 = vld [vmem:[%s192 + $0x14] sm:$0xf]
      %v209 = vld [vmem:[%s192 + $0x18] sm:$0xf]
      %v210 = vld [vmem:[%s192 + $0x1c] sm:$0xf]
      %v215 = vunpack.c.l.b16 %v199
      %v216 = vunpack.c.l.b16 %v200
      %v217 = vunpack.c.l.b16 %v201
      %v218 = vunpack.c.l.b16 %v202
      %v219 = vpack.c.b16 %v216, %v215
      %v220 = vpack.c.b16 %v218, %v217
      %v229 = vunpack.c.l.b16 %v203
      %v230 = vunpack.c.l.b16 %v204
      %v231 = vunpack.c.l.b16 %v205
      %v232 = vunpack.c.l.b16 %v206
      %v233 = vunpack.c.l.b16 %v207
      %v234 = vunpack.c.l.b16 %v208
      %v235 = vunpack.c.l.b16 %v209
      %v236 = vunpack.c.l.b16 %v210
      %v237 = vpack.c.b16 %v230, %v229
      %v238 = vpack.c.b16 %v232, %v231
      %v239 = vpack.c.b16 %v234, %v233
      %v240 = vpack.c.b16 %v236, %v235
      %vm245 = vcmask 523264
      %v247 = vsel %vm245, %v219, 0
      %v250 = vsel %vm245, %v220, 0
      %252 = vmatprep.subr.bf16.mxu0 0
      %253 = vmatpush1.bf16.msra.mxu0 0
      %254 = vmatprep.subr.bf16.mxu0 0
      %255 = vmatpush1.bf16.msra.mxu0 0
      %256 = vmatprep.subr.bf16.mxu0 0
      %257 = vmatpush1.bf16.msra.mxu0 0
      %258 = vmatprep.subr.bf16.mxu0 0
      %259 = vmatpush1.bf16.msra.mxu0 0
      %260 = vmatprep.subr.bf16.mxu0 0
      %261 = vmatpush1.bf16.msra.mxu0 %v240
      %262 = vmatprep.subr.bf16.mxu0 0
      %263 = vmatpush1.bf16.msra.mxu0 %v239
      %264 = vmatprep.subr.bf16.mxu0 0
      %265 = vmatpush1.bf16.msra.mxu0 %v238
      %266 = vmatprep.subr.bf16.mxu0 0
      %267 = vmatpush1.bf16.msra.mxu0 %v237
      %268 = vmatprep.subr.bf16.mxu0 0
      %269 = vmatpush2.bf16.msra.mxu0 0
      %270 = vmatprep.subr.bf16.mxu0 0
      %271 = vmatpush2.bf16.msra.mxu0 0
      %272 = vmatprep.subr.bf16.mxu0 0
      %273 = vmatpush2.bf16.msra.mxu0 0
      %274 = vmatprep.subr.bf16.mxu0 0
      %275 = vmatpush2.bf16.msra.mxu0 0
      %276 = vmatprep.subr.bf16.mxu0 0
      %277 = vmatpush2.bf16.msra.mxu0 0
      %278 = vmatprep.subr.bf16.mxu0 0
      %279 = vmatpush2.bf16.msra.mxu0 0
      %280 = vmatprep.subr.bf16.mxu0 0
      %281 = vmatpush2.bf16.msra.mxu0 0
      %282 = vmatprep.subr.bf16.mxu0 0
      %283 = vmatpush2.bf16.msra.mxu0 0
      %284 = vmatprep.mubr.bf16.mxu0 0
      %285 = vmatmul.mubr.bf16.gmra.mxu0 %v247
      %v286 = vpop.f32.mrf.mxu0
      %v287 = vadd.f32 0.0, %v286
      %v288 = vpop.f32.mrf.mxu0
      %v289 = vpop.f32.mrf.mxu0
      %v290 = vadd.f32 0.0, %v289
      %v291 = vpop.f32.mrf.mxu0
      %292 = vmatprep.mubr.bf16.mxu0 0
      %293 = vmatmul.mubr.bf16.gmra.mxu0 %v250
      %v294 = vpop.f32.mrf.mxu0
      %v295 = vadd.f32 0.0, %v294
      %v296 = vpop.f32.mrf.mxu0
      %v297 = vpop.f32.mrf.mxu0
      %v298 = vadd.f32 0.0, %v297
      %v299 = vpop.f32.mrf.mxu0
      %300 = vdwg.mxu0
      %v301 = vld [vmem:[%s2] sm:$0xff]
      %v302 = vld [vmem:[%s2 + $0x8] sm:$0xff]
      %v303 = vld [vmem:[%s2 + $0x10] sm:$0xff]
      %v304 = vld [vmem:[%s2 + $0x18] sm:$0xff]
      %306 = vset.pattern.permute.xlu0 0
      %307 = vperm.xlu0 %306, %v301
      %v308 = vpop.permute.xlu0 %307
      %311 = vset.pattern.permute.xlu0 0
      %312 = vperm.xlu0 %311, %v302
      %v313 = vpop.permute.xlu0 %312
      %316 = vset.pattern.permute.xlu0 0
      %317 = vperm.xlu0 %316, %v303
      %v318 = vpop.permute.xlu0 %317
      %321 = vset.pattern.permute.xlu0 0
      %322 = vperm.xlu0 %321, %v304
      %v323 = vpop.permute.xlu0 %322
      %v325 = vmul.f32 %v287, %v308
      %v326 = vmul.f32 %v290, %v313
      %v327 = vmul.f32 %v295, %v318
      %v328 = vmul.f32 %v298, %v323
      %v329 = vld [vmem:[%s3] sm:$0xff]
      %v330 = vld [vmem:[%s3 + $0x8] sm:$0xff]
      %v331 = vld [vmem:[%s3 + $0x10] sm:$0xff]
      %v332 = vld [vmem:[%s3 + $0x18] sm:$0xff]
      %334 = vset.pattern.permute.xlu0 0
      %335 = vperm.xlu0 %334, %v329
      %v336 = vpop.permute.xlu0 %335
      %339 = vset.pattern.permute.xlu0 0
      %340 = vperm.xlu0 %339, %v330
      %v341 = vpop.permute.xlu0 %340
      %344 = vset.pattern.permute.xlu0 0
      %345 = vperm.xlu0 %344, %v331
      %v346 = vpop.permute.xlu0 %345
      %349 = vset.pattern.permute.xlu0 0
      %350 = vperm.xlu0 %349, %v332
      %v351 = vpop.permute.xlu0 %350
      %v353 = vadd.f32 %v325, %v336
      %v354 = vadd.f32 %v326, %v341
      %v355 = vadd.f32 %v327, %v346
      %v356 = vadd.f32 %v328, %v351
      %vm357 = vcmask 130048
      %358 = vst.msk [vmem:[%s197] sm:$0xff] %vm357, %v353
      %359 = vst.msk [vmem:[%s197 + $0x8] sm:$0xff] %vm357, %v354
      %360 = vst.msk [vmem:[%s197 + $0x10] sm:$0xff] %vm357, %v355
      %361 = vst.msk [vmem:[%s197 + $0x18] sm:$0xff] %vm357, %v356
      %p362 = scmp.lt.s32.totalorder %s15, 1
      %s363 = scalar_select %p362, %s15, 1
      %s364 = smul.addr %s363, 4
      %s365 = smul.addr %s364, 8
      %s366 = scalar_lea.vmem %s4, %s365
      // Predicated region
      $region37: #{patch_embedding.3} parent=35 // pred_check
        %p367 = pneg %p122
      $region38: #{patch_embedding.3} parent=35 // pred_check_branch
        %369 = sbr.rel (%p367) target = $region40
      $region39: #{patch_embedding.3} parent=35 // pred_region
        _
      $region40: #{patch_embedding.3} parent=35 // pred_fallthru
        _
    $region36: #{patch_embedding.3} parent=5 // pred_fallthru
      _
    %p370 = scmp.le.s32.totalorder 2, %s10
    // Predicated region
    $region41: #{patch_embedding.3} parent=5 // pred_check
      %p371 = pneg %p370
    $region42: #{patch_embedding.3} parent=5 // pred_check_branch
      %373 = sbr.rel (%p371) target = $region44
    $region43: #{patch_embedding.3} parent=5 // pred_region
      %s374 = ssub.s32 %s10, 2
      // Predicated region
      $region45: #{patch_embedding.3} parent=43 // pred_check
        %p375 = pneg %p128
      $region46: #{patch_embedding.3} parent=43 // pred_check_branch
        %377 = sbr.rel (%p375) target = $region48
      $region47: #{patch_embedding.3} parent=43 // pred_region
        %p378 = scmp.lt.s32.totalorder %s16, 1
        %s379 = scalar_select %p378, %s16, 1
        %s380 = smul.addr %s379, 4
        %s381 = smul.addr %s380, 8
        %s382 = scalar_lea.vmem %s4, %s381
      $region48: #{patch_embedding.3} parent=43 // pred_fallthru
        _
    $region44: #{patch_embedding.3} parent=5 // pred_fallthru
      _
  $region6: #{patch_embedding.3} parent=0 // loop_footer
    %s14 = sadd.s32 1, %s10
  $region7: #{patch_embedding.3} parent=0 // loop_footer_branch
    %9 = sbr.rel target = $region3
  $region8: #{patch_embedding.3} parent=0 // loop_exit
    _

</llo_original>
